<compile_context>
chip_gen: v7x
topology: tpu7x:2x2x1
jax: 0.10.0
libtpu: 0.0.40
codegen_flags: <defaults>
</compile_context>

<pallas_src>
import functools

import jax
import jax.numpy as jnp
from jax.experimental import pallas as pl
from jax.experimental.pallas import tpu as pltpu


def _round_up(n, m):
    return ((n + m - 1) // m) * m


def _mlp_kernel(x_ref, w1_ref, t1_ref, w2_ref, t2_ref, w3_ref, b3_ref, o_ref):
    # Cast in-kernel: x streams from HBM as f32, no wrapper pre-pass over it.
    x = x_ref[...].astype(w1_ref.dtype)

    # fc1 (+ folded BatchNorm1) + ReLU.  MXU matmul, f32 accumulation.
    h1 = jnp.dot(x, w1_ref[...], preferred_element_type=jnp.float32)
    h1 = jnp.maximum(h1 + t1_ref[...], 0.0)

    # fc2 (+ folded BatchNorm2, columns zero-padded to 128 lanes) + ReLU.
    h2 = jnp.dot(h1.astype(w2_ref.dtype), w2_ref[...],
                 preferred_element_type=jnp.float32)
    h2 = jnp.maximum(h2 + t2_ref[...], 0.0)

    # fc3: output width 1 -> VPU multiply + XLU cross-lane reduce (padded
    # lanes of w3 are zero, so they contribute 0).  The per-row results are
    # produced directly in a lane-dense (TB//128, 128) layout so the store is
    # a sequence of unmasked full-lane vst instead of masked 1-lane stores.
    prod = h2 * w3_ref[...]                               # (TB, H2p) f32
    g, l = o_ref.shape                                    # (TB // 128, 128)
    out = jnp.sum(prod.reshape(g, l, prod.shape[-1]), axis=-1) + b3_ref[...]
    o_ref[...] = out.astype(o_ref.dtype)


@functools.partial(jax.jit, static_argnames=("block_b", "use_bf16"))
def audio_sentiment_forward(x, params, *, block_b=8192, use_bf16=True):
    """x: (B, input_dim) f32.  Returns (B, 1) f32 (eval-mode forward)."""
    (w1, b1, g1, beta1, rm1, rv1,
     w2, b2, g2, beta2, rm2, rv2,
     w3, b3) = params
    eps = 1e-5

    B, D = x.shape
    H1 = w1.shape[1]
    H2 = w2.shape[1]
    H2p = max(128, _round_up(H2, 128))        # lane-dense hidden2 width

    # ---- Fold BatchNorm (running stats + affine) into the linear layers ----
    s1 = g1 / jnp.sqrt(rv1 + eps)
    w1f = w1 * s1[None, :]
    t1f = ((b1 - rm1) * s1 + beta1).reshape(1, H1)

    s2 = g2 / jnp.sqrt(rv2 + eps)
    w2f = w2 * s2[None, :]
    t2f = ((b2 - rm2) * s2 + beta2).reshape(1, H2)

    # Zero-pad the hidden2 axis to a full 128-lane width.
    w2f = jnp.pad(w2f, ((0, 0), (0, H2p - H2)))
    t2f = jnp.pad(t2f, ((0, 0), (0, H2p - H2)))
    w3r = jnp.pad(w3.reshape(1, H2), ((0, 0), (0, H2p - H2)))
    b3r = b3.reshape(1, 1)

    mxu_dtype = jnp.bfloat16 if use_bf16 else jnp.float32
    w1f = w1f.astype(mxu_dtype)
    w2f = w2f.astype(mxu_dtype)

    # ---- Batch tile selection (no padding / copy of x) --------------------
    # Multi-step tiles are multiples of 1024 so the lane-dense (TB//128, 128)
    # output block keeps its sublane dim a multiple of 8.
    TB = min(_round_up(B, 1024), max(1024, _round_up(block_b, 1024)))
    if TB >= B:
        TB = max(128, _round_up(B, 128))       # single grid step covers B
    nb = pl.cdiv(B, TB)
    if nb == 1 and B > 2048:
        # Split large single-tile batches so the "parallel" grid axis can
        # feed both TensorCores on v7x.
        TB = max(1024, _round_up(pl.cdiv(B, 2), 1024))
        nb = pl.cdiv(B, TB)
    G = TB // 128                              # lane-dense output rows / step

    itemsize = jnp.dtype(mxu_dtype).itemsize
    cost = pl.CostEstimate(
        flops=2 * nb * TB * (D * H1 + H1 * H2p + H2p),
        transcendentals=0,
        bytes_accessed=(B * D * 4                      # x streamed once (f32)
                        + nb * TB * 4                  # lane-dense output
                        + (D * H1 + H1 * H2p) * itemsize
                        + (H1 + 2 * H2p + 1) * 4),     # shifts / w3 / b3
    )

    def const(a):
        return pl.BlockSpec(a.shape, lambda i: (0,) * a.ndim)

    out = pl.pallas_call(
        _mlp_kernel,
        out_shape=jax.ShapeDtypeStruct((nb * G, 128), jnp.float32),
        grid=(nb,),
        in_specs=[
            pl.BlockSpec((TB, D), lambda i: (i, 0)),   # x tile streams per step
            const(w1f), const(t1f),
            const(w2f), const(t2f),
            const(w3r), const(b3r),
        ],
        out_specs=pl.BlockSpec((G, 128), lambda i: (i, 0)),
        compiler_params=pltpu.CompilerParams(
            dimension_semantics=("parallel",),         # shards across v7x TCs
            vmem_limit_bytes=48 * 1024 * 1024,         # fits v7x 64 MiB VMEM
        ),
        cost_estimate=cost,
    )(x, w1f, t1f, w2f, t2f, w3r, b3r)

    # nb*G*128 == nb*TB >= B; trailing garbage rows (from ragged last block)
    # are discarded here.
    return out.reshape(-1)[:B].reshape(B, 1)


def init_params(input_dim, hidden_dim=128, seed=42):
    """Deterministic synthetic parameters matching the PyTorch module shapes."""
    h2 = hidden_dim // 2
    keys = jax.random.split(jax.random.PRNGKey(seed), 8)

    def linear(kw, kb, fan_in, fan_out):
        lim = 1.0 / jnp.sqrt(fan_in)
        w = jax.random.uniform(kw, (fan_in, fan_out), jnp.float32, -lim, lim)
        b = jax.random.uniform(kb, (fan_out,), jnp.float32, -lim, lim)
        return w, b

    w1, b1 = linear(keys[0], keys[1], input_dim, hidden_dim)
    w2, b2 = linear(keys[2], keys[3], hidden_dim, h2)
    w3, b3 = linear(keys[4], keys[5], h2, 1)

    # BatchNorm: gamma, beta, running_mean, running_var (non-trivial, deterministic).
    g1 = 1.0 + 0.1 * jnp.cos(jnp.arange(hidden_dim, dtype=jnp.float32))
    beta1 = 0.05 * jnp.sin(jnp.arange(hidden_dim, dtype=jnp.float32))
    rm1 = 0.02 * jnp.arange(hidden_dim, dtype=jnp.float32) / hidden_dim
    rv1 = 1.0 + 0.1 * jnp.abs(jnp.sin(jnp.arange(hidden_dim, dtype=jnp.float32)))

    g2 = 1.0 + 0.1 * jnp.cos(jnp.arange(h2, dtype=jnp.float32))
    beta2 = 0.05 * jnp.sin(jnp.arange(h2, dtype=jnp.float32))
    rm2 = 0.02 * jnp.arange(h2, dtype=jnp.float32) / h2
    rv2 = 1.0 + 0.1 * jnp.abs(jnp.sin(jnp.arange(h2, dtype=jnp.float32)))

    return (w1, b1, g1, beta1, rm1, rv1,
            w2, b2, g2, beta2, rm2, rv2,
            w3, b3)


def reference_forward(x, params):
    """Pure-JAX f32 reference for correctness checking (eval-mode)."""
    (w1, b1, g1, beta1, rm1, rv1,
     w2, b2, g2, beta2, rm2, rv2,
     w3, b3) = params
    eps = 1e-5
    h = x @ w1 + b1
    h = (h - rm1) / jnp.sqrt(rv1 + eps) * g1 + beta1
    h = jnp.maximum(h, 0.0)
    h = h @ w2 + b2
    h = (h - rm2) / jnp.sqrt(rv2 + eps) * g2 + beta2
    h = jnp.maximum(h, 0.0)
    return h @ w3 + b3


if __name__ == "__main__":
    input_dim = 32
    hidden_dim = 128
    params = init_params(input_dim, hidden_dim)

    keys = jax.random.split(jax.random.PRNGKey(0), 3)
    cases = [
        # Small canonical batch (single grid step, single lane-dense out row).
        (jax.random.normal(keys[0], (16, input_dim), jnp.float32), 8192),
        # Larger batch: exercises the dual-TC split (2 parallel grid steps)
        # plus a ragged last x block.
        (jax.random.normal(keys[1], (4000, input_dim), jnp.float32), 8192),
        # Multi-step grid (3 steps) with a ragged last block.
        (jax.random.normal(keys[2], (2500, input_dim), jnp.float32), 1024),
    ]

    for x, bb in cases:
        ref = reference_forward(x, params)

        out_f32 = jax.block_until_ready(
            audio_sentiment_forward(x, params, block_b=bb, use_bf16=False))
        assert out_f32.shape == (x.shape[0], 1), out_f32.shape
        err = float(jnp.max(jnp.abs(out_f32 - ref)))
        assert err < 1e-3, f"f32 path max abs err {err}"

        out_bf16 = jax.block_until_ready(
            audio_sentiment_forward(x, params, block_b=bb, use_bf16=True))
        assert out_bf16.shape == (x.shape[0], 1), out_bf16.shape
        err = float(jnp.max(jnp.abs(out_bf16 - ref)))
        assert err < 2e-1, f"bf16 path max abs err {err}"

    print("KERNEL_OK")
</pallas_src>

<mosaic_0001>
module attributes {stable_mosaic.version = 11 : i64} {
  func.func @_mlp_kernel(%arg0: i32, %arg1: memref<128x32xf32, #tpu.memory_space<vmem>>, %arg2: memref<32x128xf32, #tpu.memory_space<vmem>>, %arg3: memref<1x128xf32, #tpu.memory_space<vmem>>, %arg4: memref<128x128xf32, #tpu.memory_space<vmem>>, %arg5: memref<1x128xf32, #tpu.memory_space<vmem>>, %arg6: memref<1x128xf32, #tpu.memory_space<vmem>>, %arg7: memref<1x1xf32, #tpu.memory_space<vmem>>, %arg8: memref<1x128xf32, #tpu.memory_space<vmem>>) attributes {dimension_semantics = [#tpu.dimension_semantics<parallel>], iteration_bounds = array<i64: 1>, scalar_prefetch = 0 : i64, scratch_operands = 0 : i64, tpu.core_type = #tpu.core_type<tc>, window_params = [{transform_indices = @transform_0, window_bounds = array<i64: 128, 32>}, {pipeline_mode = #tpu.pipeline_mode<synchronous>, transform_indices = @transform_1, window_bounds = array<i64: 32, 128>}, {pipeline_mode = #tpu.pipeline_mode<synchronous>, transform_indices = @transform_2, window_bounds = array<i64: 1, 128>}, {pipeline_mode = #tpu.pipeline_mode<synchronous>, transform_indices = @transform_3, window_bounds = array<i64: 128, 128>}, {pipeline_mode = #tpu.pipeline_mode<synchronous>, transform_indices = @transform_4, window_bounds = array<i64: 1, 128>}, {pipeline_mode = #tpu.pipeline_mode<synchronous>, transform_indices = @transform_5, window_bounds = array<i64: 1, 128>}, {pipeline_mode = #tpu.pipeline_mode<synchronous>, transform_indices = @transform_6, window_bounds = array<i64: 1, 1>}, {transform_indices = @transform_7, window_bounds = array<i64: 1, 128>}]} {
    %c0 = arith.constant 0 : index
    %c0_0 = arith.constant 0 : index
    %0 = vector.load %arg1[%c0, %c0_0] : memref<128x32xf32, #tpu.memory_space<vmem>>, vector<128x32xf32>
    %c0_1 = arith.constant 0 : index
    %c0_2 = arith.constant 0 : index
    %1 = vector.load %arg2[%c0_1, %c0_2] : memref<32x128xf32, #tpu.memory_space<vmem>>, vector<32x128xf32>
    %cst = arith.constant dense<0.000000e+00> : vector<128x128xf32>
    %2 = tpu.matmul %0, %1, %cst {dimension_numbers = #tpu.dot_dimension_numbers<[1], [0], [0], [1], [0, 0, 1, 1], [], []>} : vector<128x32xf32>, vector<32x128xf32>, vector<128x128xf32> -> vector<128x128xf32>
    %c0_3 = arith.constant 0 : index
    %c0_4 = arith.constant 0 : index
    %3 = vector.load %arg3[%c0_3, %c0_4] : memref<1x128xf32, #tpu.memory_space<vmem>>, vector<1x128xf32>
    %4 = vector.broadcast %3 : vector<1x128xf32> to vector<128x128xf32>
    %5 = arith.addf %2, %4 : vector<128x128xf32>
    %cst_5 = arith.constant 0.000000e+00 : f32
    %6 = vector.broadcast %cst_5 : f32 to vector<128x128xf32>
    %7 = arith.maximumf %5, %6 : vector<128x128xf32>
    %c0_6 = arith.constant 0 : index
    %c0_7 = arith.constant 0 : index
    %8 = vector.load %arg4[%c0_6, %c0_7] : memref<128x128xf32, #tpu.memory_space<vmem>>, vector<128x128xf32>
    %cst_8 = arith.constant dense<0.000000e+00> : vector<128x128xf32>
    %9 = tpu.matmul %7, %8, %cst_8 {dimension_numbers = #tpu.dot_dimension_numbers<[1], [0], [0], [1], [0, 0, 1, 1], [], []>} : vector<128x128xf32>, vector<128x128xf32>, vector<128x128xf32> -> vector<128x128xf32>
    %c0_9 = arith.constant 0 : index
    %c0_10 = arith.constant 0 : index
    %10 = vector.load %arg5[%c0_9, %c0_10] : memref<1x128xf32, #tpu.memory_space<vmem>>, vector<1x128xf32>
    %11 = vector.broadcast %10 : vector<1x128xf32> to vector<128x128xf32>
    %12 = arith.addf %9, %11 : vector<128x128xf32>
    %cst_11 = arith.constant 0.000000e+00 : f32
    %13 = vector.broadcast %cst_11 : f32 to vector<128x128xf32>
    %14 = arith.maximumf %12, %13 : vector<128x128xf32>
    %c0_12 = arith.constant 0 : index
    %c0_13 = arith.constant 0 : index
    %15 = vector.load %arg6[%c0_12, %c0_13] : memref<1x128xf32, #tpu.memory_space<vmem>>, vector<1x128xf32>
    %16 = vector.broadcast %15 : vector<1x128xf32> to vector<128x128xf32>
    %17 = arith.mulf %14, %16 : vector<128x128xf32>
    %18 = vector.shape_cast %17 : vector<128x128xf32> to vector<1x128x128xf32>
    %cst_14 = arith.constant dense<0.000000e+00> : vector<1x128xf32>
    %19 = vector.multi_reduction <add>, %18, %cst_14 [2] : vector<1x128x128xf32> to vector<1x128xf32>
    %c0_15 = arith.constant 0 : index
    %c0_16 = arith.constant 0 : index
    %20 = vector.load %arg7[%c0_15, %c0_16] : memref<1x1xf32, #tpu.memory_space<vmem>>, vector<1x1xf32>
    %21 = vector.broadcast %20 : vector<1x1xf32> to vector<1x128xf32>
    %22 = arith.addf %19, %21 : vector<1x128xf32>
    %c0_17 = arith.constant 0 : index
    %c0_18 = arith.constant 0 : index
    %23 = vector.load %arg8[%c0_17, %c0_18] : memref<1x128xf32, #tpu.memory_space<vmem>>, vector<1x128xf32>
    tpu.vector_store %arg8[%c0_17, %c0_18], %22 {strides = array<i32>} : memref<1x128xf32, #tpu.memory_space<vmem>>, vector<1x128xf32>,
    return
  }
  func.func @transform_0(%arg0: i32) -> (i32, i32) {
    %c0_i32 = arith.constant 0 : i32
    %c0_i32_0 = arith.constant 0 : i32
    return %arg0, %c0_i32 : i32, i32
  }
  func.func @transform_1(%arg0: i32) -> (i32, i32) {
    %c0_i32 = arith.constant 0 : i32
    %c0_i32_0 = arith.constant 0 : i32
    %c0_i32_1 = arith.constant 0 : i32
    return %c0_i32, %c0_i32_0 : i32, i32
  }
  func.func @transform_2(%arg0: i32) -> (i32, i32) {
    %c0_i32 = arith.constant 0 : i32
    %c0_i32_0 = arith.constant 0 : i32
    %c0_i32_1 = arith.constant 0 : i32
    return %c0_i32, %c0_i32_0 : i32, i32
  }
  func.func @transform_3(%arg0: i32) -> (i32, i32) {
    %c0_i32 = arith.constant 0 : i32
    %c0_i32_0 = arith.constant 0 : i32
    %c0_i32_1 = arith.constant 0 : i32
    return %c0_i32, %c0_i32_0 : i32, i32
  }
  func.func @transform_4(%arg0: i32) -> (i32, i32) {
    %c0_i32 = arith.constant 0 : i32
    %c0_i32_0 = arith.constant 0 : i32
    %c0_i32_1 = arith.constant 0 : i32
    return %c0_i32, %c0_i32_0 : i32, i32
  }
  func.func @transform_5(%arg0: i32) -> (i32, i32) {
    %c0_i32 = arith.constant 0 : i32
    %c0_i32_0 = arith.constant 0 : i32
    %c0_i32_1 = arith.constant 0 : i32
    return %c0_i32, %c0_i32_0 : i32, i32
  }
  func.func @transform_6(%arg0: i32) -> (i32, i32) {
    %c0_i32 = arith.constant 0 : i32
    %c0_i32_0 = arith.constant 0 : i32
    %c0_i32_1 = arith.constant 0 : i32
    return %c0_i32, %c0_i32_0 : i32, i32
  }
  func.func @transform_7(%arg0: i32) -> (i32, i32) {
    %c0_i32 = arith.constant 0 : i32
    %c0_i32_0 = arith.constant 0 : i32
    return %arg0, %c0_i32 : i32, i32
  }
}

</mosaic_0001>

<llo_original>
// kernel: audio_sentiment_forward.1
$region0: #{audio_sentiment_forward.1}
  #allocation0 [shape = 'u32[]', space=smem, size = 0x4, offset = 0x4, fixed_abs, tag = 'smem constant byte address 0x4 - core index']
  #allocation1 [shape = 'u32[144,128]{1,0:T(1,128)}', space=vmem, size = 0x12000, scoped, tag = 'internal scratch']
  #allocation2 [shape = 'f32[1,1]{1,0:T(1,128)S(1)}', space=vmem, size = 0x200, scoped, tag = 'scoped memory for audio_sentiment_forward.1']
  %s0 = inlined_call_operand.vmem [shape: f32[16,32], index: 0, kind: input, shape index: {}]
  %s1 = inlined_call_operand.vmem [shape: f32[32,128], index: 1, kind: input, shape index: {}]
  %s2 = inlined_call_operand.vmem [shape: f32[1,128], index: 2, kind: input, shape index: {}]
  %s3 = inlined_call_operand.vmem [shape: f32[128,128], index: 3, kind: input, shape index: {}]
  %s4 = inlined_call_operand.vmem [shape: f32[1,128], index: 4, kind: input, shape index: {}]
  %s5 = inlined_call_operand.vmem [shape: f32[1,128], index: 5, kind: input, shape index: {}]
  %s6 = inlined_call_operand.<no memory space> [shape: f32[1,1], index: 6, kind: input, shape index: {}]
  %s7 = inlined_call_operand.vmem [shape: f32[1,128], index: 7, kind: output, shape index: {}]
  %s8 = sld [smem:[#allocation0]]
  $region38: #{audio_sentiment_forward.1} parent=0
    _
  %s10 = ssub.s32 1, %s8
  %s11 = scalar_select 0, %s10, %s8
  %v12 = vstv %s6
  %13 = vst [vmem:[#allocation2] sm:$0x1] %v12
  // Predicated region
  $region2: #{audio_sentiment_forward.1} parent=0 // pred_check
    _
  $region3: #{audio_sentiment_forward.1} parent=0 // pred_check_branch
    %15 = sbr.rel (0) target = $region5
  $region4: #{audio_sentiment_forward.1} parent=0 // pred_region
    _
  $region5: #{audio_sentiment_forward.1} parent=0 // pred_fallthru
    _
  // Predicated region
  $region6: #{audio_sentiment_forward.1} parent=0 // pred_check
    _
  $region7: #{audio_sentiment_forward.1} parent=0 // pred_check_branch
    %17 = sbr.rel (0) target = $region9
  $region8: #{audio_sentiment_forward.1} parent=0 // pred_region
    _
  $region9: #{audio_sentiment_forward.1} parent=0 // pred_fallthru
    _
  // Predicated region
  $region10: #{audio_sentiment_forward.1} parent=0 // pred_check
    _
  $region11: #{audio_sentiment_forward.1} parent=0 // pred_check_branch
    %19 = sbr.rel (0) target = $region13
  $region12: #{audio_sentiment_forward.1} parent=0 // pred_region
    _
  $region13: #{audio_sentiment_forward.1} parent=0 // pred_fallthru
    _
  // Predicated region
  $region14: #{audio_sentiment_forward.1} parent=0 // pred_check
    _
  $region15: #{audio_sentiment_forward.1} parent=0 // pred_check_branch
    %21 = sbr.rel (0) target = $region17
  $region16: #{audio_sentiment_forward.1} parent=0 // pred_region
    _
  $region17: #{audio_sentiment_forward.1} parent=0 // pred_fallthru
    _
  // Predicated region
  $region18: #{audio_sentiment_forward.1} parent=0 // pred_check
    _
  $region19: #{audio_sentiment_forward.1} parent=0 // pred_check_branch
    %23 = sbr.rel (0) target = $region21
  $region20: #{audio_sentiment_forward.1} parent=0 // pred_region
    _
  $region21: #{audio_sentiment_forward.1} parent=0 // pred_fallthru
    _
  // Predicated region
  $region22: #{audio_sentiment_forward.1} parent=0 // pred_check
    _
  $region23: #{audio_sentiment_forward.1} parent=0 // pred_check_branch
    %25 = sbr.rel (0) target = $region25
  $region24: #{audio_sentiment_forward.1} parent=0 // pred_region
    _
  $region25: #{audio_sentiment_forward.1} parent=0 // pred_fallthru
    _
  // Predicated region
  $region26: #{audio_sentiment_forward.1} parent=0 // pred_check
    _
  $region27: #{audio_sentiment_forward.1} parent=0 // pred_check_branch
    %27 = sbr.rel (0) target = $region29
  $region28: #{audio_sentiment_forward.1} parent=0 // pred_region
    _
  $region29: #{audio_sentiment_forward.1} parent=0 // pred_fallthru
    _
  %v28 = vld [vmem:[%s0] sm:$0xff]
  %v29 = vld [vmem:[%s0 + $0x8] sm:$0xff]
  %v30 = vld [vmem:[%s0 + $0x10] sm:$0xff]
  %v31 = vld [vmem:[%s0 + $0x18] sm:$0xff]
  %v32 = vld [vmem:[%s0 + $0x20] sm:$0xff]
  %v33 = vld [vmem:[%s0 + $0x28] sm:$0xff]
  %v34 = vld [vmem:[%s0 + $0x30] sm:$0xff]
  %v35 = vld [vmem:[%s0 + $0x38] sm:$0xff]
  %v36 = vld [vmem:[%s0 + $0x40] sm:$0xff]
  %v37 = vld [vmem:[%s0 + $0x48] sm:$0xff]
  %v38 = vld [vmem:[%s0 + $0x50] sm:$0xff]
  %v39 = vld [vmem:[%s0 + $0x58] sm:$0xff]
  %v40 = vld [vmem:[%s0 + $0x60] sm:$0xff]
  %v41 = vld [vmem:[%s0 + $0x68] sm:$0xff]
  %v42 = vld [vmem:[%s0 + $0x70] sm:$0xff]
  %v43 = vld [vmem:[%s0 + $0x78] sm:$0xff]
  %v44 = vld [vmem:[%s1] sm:$0xff]
  %v45 = vld [vmem:[%s1 + $0x8] sm:$0xff]
  %v46 = vld [vmem:[%s1 + $0x10] sm:$0xff]
  %v47 = vld [vmem:[%s1 + $0x18] sm:$0xff]
  %v48 = vld [vmem:[%s2] sm:$0x1]
  %v50 = vlaneseq
  %v51 = vshrl.u32 %v50, 7
  %v52 = vsub.s32 0, %v51
  %v53 = vrot.slane %v48, %v52
  %vm55 = vcmask 261120
  %v57 = vsel %vm55, %v28, 0
  %v60 = vsel %vm55, %v29, 0
  %v63 = vsel %vm55, %v30, 0
  %v66 = vsel %vm55, %v31, 0
  %v69 = vsel %vm55, %v32, 0
  %v72 = vsel %vm55, %v33, 0
  %v75 = vsel %vm55, %v34, 0
  %v78 = vsel %vm55, %v35, 0
  %v81 = vsel %vm55, %v36, 0
  %v84 = vsel %vm55, %v37, 0
  %v87 = vsel %vm55, %v38, 0
  %v90 = vsel %vm55, %v39, 0
  %v93 = vsel %vm55, %v40, 0
  %v96 = vsel %vm55, %v41, 0
  %v99 = vsel %vm55, %v42, 0
  %v102 = vsel %vm55, %v43, 0
  %104 = vmatprep.subr.mxu0 0.0
  %105 = vmatpush1.msra.mxu0 %v44
  %106 = vmatprep.subr.mxu0 0.0
  %107 = vmatpush1.msra.mxu0 %v45
  %108 = vmatprep.subr.mxu0 0.0
  %109 = vmatpush1.msra.mxu0 %v46
  %110 = vmatprep.subr.mxu0 0.0
  %111 = vmatpush1.msra.mxu0 %v47
  %112 = vmatprep.subr.mxu0 0.0
  %113 = vmatpush1.msra.mxu0 0.0
  %114 = vmatprep.subr.mxu0 0.0
  %115 = vmatpush1.msra.mxu0 0.0
  %116 = vmatprep.subr.mxu0 0.0
  %117 = vmatpush1.msra.mxu0 0.0
  %118 = vmatprep.subr.mxu0 0.0
  %119 = vmatpush1.msra.mxu0 0.0
  %120 = vmatprep.subr.mxu0 0.0
  %121 = vmatpush1.msra.mxu0 0.0
  %122 = vmatprep.subr.mxu0 0.0
  %123 = vmatpush1.msra.mxu0 0.0
  %124 = vmatprep.subr.mxu0 0.0
  %125 = vmatpush1.msra.mxu0 0.0
  %126 = vmatprep.subr.mxu0 0.0
  %127 = vmatpush1.msra.mxu0 0.0
  %128 = vmatprep.subr.mxu0 0.0
  %129 = vmatpush1.msra.mxu0 0.0
  %130 = vmatprep.subr.mxu0 0.0
  %131 = vmatpush1.msra.mxu0 0.0
  %132 = vmatprep.subr.mxu0 0.0
  %133 = vmatpush1.msra.mxu0 0.0
  %134 = vmatprep.subr.mxu0 0.0
  %135 = vmatpush1.msra.mxu0 0.0
  %136 = vmatprep.subr.mxu0 0.0
  %137 = vmatpush1.msra.mxu0 0.0
  %138 = vmatprep.subr.mxu0 0.0
  %139 = vmatpush1.msra.mxu0 0.0
  %140 = vmatprep.subr.mxu0 0.0
  %141 = vmatpush1.msra.mxu0 0.0
  %142 = vmatprep.subr.mxu0 0.0
  %143 = vmatpush1.msra.mxu0 0.0
  %144 = vmatprep.subr.mxu0 0.0
  %145 = vmatpush1.msra.mxu0 0.0
  %146 = vmatprep.subr.mxu0 0.0
  %147 = vmatpush1.msra.mxu0 0.0
  %148 = vmatprep.subr.mxu0 0.0
  %149 = vmatpush1.msra.mxu0 0.0
  %150 = vmatprep.subr.mxu0 0.0
  %151 = vmatpush1.msra.mxu0 0.0
  %152 = vmatprep.subr.mxu0 0.0
  %153 = vmatpush1.msra.mxu0 0.0
  %154 = vmatprep.subr.mxu0 0.0
  %155 = vmatpush1.msra.mxu0 0.0
  %156 = vmatprep.subr.mxu0 0.0
  %157 = vmatpush1.msra.mxu0 0.0
  %158 = vmatprep.subr.mxu0 0.0
  %159 = vmatpush1.msra.mxu0 0.0
  %160 = vmatprep.subr.mxu0 0.0
  %161 = vmatpush1.msra.mxu0 0.0
  %162 = vmatprep.subr.mxu0 0.0
  %163 = vmatpush1.msra.mxu0 0.0
  %164 = vmatprep.subr.mxu0 0.0
  %165 = vmatpush1.msra.mxu0 0.0
  %166 = vmatprep.subr.mxu0 0.0
  %167 = vmatpush1.msra.mxu0 0.0
  %168 = vmatprep.mubr.f32.mxu0 0.0
  %169 = vmatmul.mubr.f32.gmra.mrb[0].mxu0 %v57
  %v170 = vpop.f32.mrb[0].mxu0
  %v171 = vadd.f32 %v53, %v170
  %v172 = vpop.f32.mrb[0].mxu0
  %173 = vmatprep.mubr.f32.mxu0 0.0
  %174 = vmatmul.mubr.f32.gmra.mrb[0].mxu0 %v60
  %v175 = vpop.f32.mrb[0].mxu0
  %v176 = vadd.f32 %v53, %v175
  %v177 = vpop.f32.mrb[0].mxu0
  %178 = vmatprep.mubr.f32.mxu0 0.0
  %179 = vmatmul.mubr.f32.gmra.mrb[0].mxu0 %v63
  %v180 = vpop.f32.mrb[0].mxu0
  %v181 = vadd.f32 %v53, %v180
  %v182 = vpop.f32.mrb[0].mxu0
  %183 = vmatprep.mubr.f32.mxu0 0.0
  %184 = vmatmul.mubr.f32.gmra.mrb[0].mxu0 %v66
  %v185 = vpop.f32.mrb[0].mxu0
  %v186 = vadd.f32 %v53, %v185
  %v187 = vpop.f32.mrb[0].mxu0
  %188 = vmatprep.mubr.f32.mxu0 0.0
  %189 = vmatmul.mubr.f32.gmra.mrb[0].mxu0 %v69
  %v190 = vpop.f32.mrb[0].mxu0
  %v191 = vadd.f32 %v53, %v190
  %v192 = vpop.f32.mrb[0].mxu0
  %193 = vmatprep.mubr.f32.mxu0 0.0
  %194 = vmatmul.mubr.f32.gmra.mrb[0].mxu0 %v72
  %v195 = vpop.f32.mrb[0].mxu0
  %v196 = vadd.f32 %v53, %v195
  %v197 = vpop.f32.mrb[0].mxu0
  %198 = vmatprep.mubr.f32.mxu0 0.0
  %199 = vmatmul.mubr.f32.gmra.mrb[0].mxu0 %v75
  %v200 = vpop.f32.mrb[0].mxu0
  %v201 = vadd.f32 %v53, %v200
  %v202 = vpop.f32.mrb[0].mxu0
  %203 = vmatprep.mubr.f32.mxu0 0.0
  %204 = vmatmul.mubr.f32.gmra.mrb[0].mxu0 %v78
  %v205 = vpop.f32.mrb[0].mxu0
  %v206 = vadd.f32 %v53, %v205
  %v207 = vpop.f32.mrb[0].mxu0
  %208 = vmatprep.mubr.f32.mxu0 0.0
  %209 = vmatmul.mubr.f32.gmra.mrb[0].mxu0 %v81
  %v210 = vpop.f32.mrb[0].mxu0
  %v211 = vadd.f32 %v53, %v210
  %v212 = vpop.f32.mrb[0].mxu0
  %213 = vmatprep.mubr.f32.mxu0 0.0
  %214 = vmatmul.mubr.f32.gmra.mrb[0].mxu0 %v84
  %v215 = vpop.f32.mrb[0].mxu0
  %v216 = vadd.f32 %v53, %v215
  %v217 = vpop.f32.mrb[0].mxu0
  %218 = vmatprep.mubr.f32.mxu0 0.0
  %219 = vmatmul.mubr.f32.gmra.mrb[0].mxu0 %v87
  %v220 = vpop.f32.mrb[0].mxu0
  %v221 = vadd.f32 %v53, %v220
  %v222 = vpop.f32.mrb[0].mxu0
  %223 = vmatprep.mubr.f32.mxu0 0.0
  %224 = vmatmul.mubr.f32.gmra.mrb[0].mxu0 %v90
  %v225 = vpop.f32.mrb[0].mxu0
  %v226 = vadd.f32 %v53, %v225
  %v227 = vpop.f32.mrb[0].mxu0
  %228 = vmatprep.mubr.f32.mxu0 0.0
  %229 = vmatmul.mubr.f32.gmra.mrb[0].mxu0 %v93
  %v230 = vpop.f32.mrb[0].mxu0
  %v231 = vadd.f32 %v53, %v230
  %v232 = vpop.f32.mrb[0].mxu0
  %233 = vmatprep.mubr.f32.mxu0 0.0
  %234 = vmatmul.mubr.f32.gmra.mrb[0].mxu0 %v96
  %v235 = vpop.f32.mrb[0].mxu0
  %v236 = vadd.f32 %v53, %v235
  %v237 = vpop.f32.mrb[0].mxu0
  %238 = vmatprep.mubr.f32.mxu0 0.0
  %239 = vmatmul.mubr.f32.gmra.mrb[0].mxu0 %v99
  %v240 = vpop.f32.mrb[0].mxu0
  %v241 = vadd.f32 %v53, %v240
  %v242 = vpop.f32.mrb[0].mxu0
  %243 = vmatprep.mubr.f32.mxu0 0.0
  %244 = vmatmul.mubr.f32.gmra.mrb[0].mxu0 %v102
  %v245 = vpop.f32.mrb[0].mxu0
  %v246 = vadd.f32 %v53, %v245
  %v247 = vpop.f32.mrb[0].mxu0
  %248 = vdwg.mxu0
  %v249 = vmax.f32 %v171, 0.0
  %v250 = vmax.f32 %v176, 0.0
  %v251 = vmax.f32 %v181, 0.0
  %v252 = vmax.f32 %v186, 0.0
  %v253 = vmax.f32 %v191, 0.0
  %v254 = vmax.f32 %v196, 0.0
  %v255 = vmax.f32 %v201, 0.0
  %v256 = vmax.f32 %v206, 0.0
  %v257 = vmax.f32 %v211, 0.0
  %v258 = vmax.f32 %v216, 0.0
  %v259 = vmax.f32 %v221, 0.0
  %v260 = vmax.f32 %v226, 0.0
  %v261 = vmax.f32 %v231, 0.0
  %v262 = vmax.f32 %v236, 0.0
  %v263 = vmax.f32 %v241, 0.0
  %v264 = vmax.f32 %v246, 0.0
  %v265 = vld [vmem:[%s3] sm:$0xff]
  %v266 = vld [vmem:[%s3 + $0x8] sm:$0xff]
  %v267 = vld [vmem:[%s3 + $0x10] sm:$0xff]
  %v268 = vld [vmem:[%s3 + $0x18] sm:$0xff]
  %v269 = vld [vmem:[%s3 + $0x20] sm:$0xff]
  %v270 = vld [vmem:[%s3 + $0x28] sm:$0xff]
  %v271 = vld [vmem:[%s3 + $0x30] sm:$0xff]
  %v272 = vld [vmem:[%s3 + $0x38] sm:$0xff]
  %v273 = vld [vmem:[%s3 + $0x40] sm:$0xff]
  %v274 = vld [vmem:[%s3 + $0x48] sm:$0xff]
  %v275 = vld [vmem:[%s3 + $0x50] sm:$0xff]
  %v276 = vld [vmem:[%s3 + $0x58] sm:$0xff]
  %v277 = vld [vmem:[%s3 + $0x60] sm:$0xff]
  %v278 = vld [vmem:[%s3 + $0x68] sm:$0xff]
  %v279 = vld [vmem:[%s3 + $0x70] sm:$0xff]
  %v280 = vld [vmem:[%s3 + $0x78] sm:$0xff]
  %v281 = vld [vmem:[%s4] sm:$0x1]
  %v283 = vlaneseq
  %v284 = vshrl.u32 %v283, 7
  %v285 = vsub.s32 0, %v284
  %v286 = vrot.slane %v281, %v285
  %288 = vmatprep.subr.mxu0 0.0
  %289 = vmatpush1.msra.mxu0 %v265
  %290 = vmatprep.subr.mxu0 0.0
  %291 = vmatpush1.msra.mxu0 %v266
  %292 = vmatprep.subr.mxu0 0.0
  %293 = vmatpush1.msra.mxu0 %v267
  %294 = vmatprep.subr.mxu0 0.0
  %295 = vmatpush1.msra.mxu0 %v268
  %296 = vmatprep.subr.mxu0 0.0
  %297 = vmatpush1.msra.mxu0 %v269
  %298 = vmatprep.subr.mxu0 0.0
  %299 = vmatpush1.msra.mxu0 %v270
  %300 = vmatprep.subr.mxu0 0.0
  %301 = vmatpush1.msra.mxu0 %v271
  %302 = vmatprep.subr.mxu0 0.0
  %303 = vmatpush1.msra.mxu0 %v272
  %304 = vmatprep.subr.mxu0 0.0
  %305 = vmatpush1.msra.mxu0 %v273
  %306 = vmatprep.subr.mxu0 0.0
  %307 = vmatpush1.msra.mxu0 %v274
  %308 = vmatprep.subr.mxu0 0.0
  %309 = vmatpush1.msra.mxu0 %v275
  %310 = vmatprep.subr.mxu0 0.0
  %311 = vmatpush1.msra.mxu0 %v276
  %312 = vmatprep.subr.mxu0 0.0
  %313 = vmatpush1.msra.mxu0 %v277
  %314 = vmatprep.subr.mxu0 0.0
  %315 = vmatpush1.msra.mxu0 %v278
  %316 = vmatprep.subr.mxu0 0.0
  %317 = vmatpush1.msra.mxu0 %v279
  %318 = vmatprep.subr.mxu0 0.0
  %319 = vmatpush1.msra.mxu0 %v280
  %320 = vmatprep.subr.mxu0 0.0
  %321 = vmatpush1.msra.mxu0 0.0
  %322 = vmatprep.subr.mxu0 0.0
  %323 = vmatpush1.msra.mxu0 0.0
  %324 = vmatprep.subr.mxu0 0.0
  %325 = vmatpush1.msra.mxu0 0.0
  %326 = vmatprep.subr.mxu0 0.0
  %327 = vmatpush1.msra.mxu0 0.0
  %328 = vmatprep.subr.mxu0 0.0
  %329 = vmatpush1.msra.mxu0 0.0
  %330 = vmatprep.subr.mxu0 0.0
  %331 = vmatpush1.msra.mxu0 0.0
  %332 = vmatprep.subr.mxu0 0.0
  %333 = vmatpush1.msra.mxu0 0.0
  %334 = vmatprep.subr.mxu0 0.0
  %335 = vmatpush1.msra.mxu0 0.0
  %336 = vmatprep.subr.mxu0 0.0
  %337 = vmatpush1.msra.mxu0 0.0
  %338 = vmatprep.subr.mxu0 0.0
  %339 = vmatpush1.msra.mxu0 0.0
  %340 = vmatprep.subr.mxu0 0.0
  %341 = vmatpush1.msra.mxu0 0.0
  %342 = vmatprep.subr.mxu0 0.0
  %343 = vmatpush1.msra.mxu0 0.0
  %344 = vmatprep.subr.mxu0 0.0
  %345 = vmatpush1.msra.mxu0 0.0
  %346 = vmatprep.subr.mxu0 0.0
  %347 = vmatpush1.msra.mxu0 0.0
  %348 = vmatprep.subr.mxu0 0.0
  %349 = vmatpush1.msra.mxu0 0.0
  %350 = vmatprep.subr.mxu0 0.0
  %351 = vmatpush1.msra.mxu0 0.0
  %352 = vmatprep.mubr.f32.mxu0 0.0
  %353 = vmatmul.mubr.f32.gmra.mrb[0].mxu0 %v249
  %v354 = vpop.f32.mrb[0].mxu0
  %v355 = vadd.f32 %v286, %v354
  %v356 = vpop.f32.mrb[0].mxu0
  %357 = vmatprep.mubr.f32.mxu0 0.0
  %358 = vmatmul.mubr.f32.gmra.mrb[0].mxu0 %v250
  %v359 = vpop.f32.mrb[0].mxu0
  %v360 = vadd.f32 %v286, %v359
  %v361 = vpop.f32.mrb[0].mxu0
  %362 = vmatprep.mubr.f32.mxu0 0.0
  %363 = vmatmul.mubr.f32.gmra.mrb[0].mxu0 %v251
  %v364 = vpop.f32.mrb[0].mxu0
  %v365 = vadd.f32 %v286, %v364
  %v366 = vpop.f32.mrb[0].mxu0
  %367 = vmatprep.mubr.f32.mxu0 0.0
  %368 = vmatmul.mubr.f32.gmra.mrb[0].mxu0 %v252
  %v369 = vpop.f32.mrb[0].mxu0
  %v370 = vadd.f32 %v286, %v369
  %v371 = vpop.f32.mrb[0].mxu0
  %372 = vmatprep.mubr.f32.mxu0 0.0
  %373 = vmatmul.mubr.f32.gmra.mrb[0].mxu0 %v253
  %v374 = vpop.f32.mrb[0].mxu0
  %v375 = vadd.f32 %v286, %v374
  %v376 = vpop.f32.mrb[0].mxu0
  %377 = vmatprep.mubr.f32.mxu0 0.0
  %378 = vmatmul.mubr.f32.gmra.mrb[0].mxu0 %v254
  %v379 = vpop.f32.mrb[0].mxu0
  %v380 = vadd.f32 %v286, %v379
  %v381 = vpop.f32.mrb[0].mxu0
  %382 = vmatprep.mubr.f32.mxu0 0.0
  %383 = vmatmul.mubr.f32.gmra.mrb[0].mxu0 %v255
  %v384 = vpop.f32.mrb[0].mxu0
  %v385 = vadd.f32 %v286, %v384
  %v386 = vpop.f32.mrb[0].mxu0
  %387 = vmatprep.mubr.f32.mxu0 0.0
  %388 = vmatmul.mubr.f32.gmra.mrb[0].mxu0 %v256
  %v389 = vpop.f32.mrb[0].mxu0
  %v390 = vadd.f32 %v286, %v389
  %v391 = vpop.f32.mrb[0].mxu0
  %392 = vmatprep.mubr.f32.mxu0 0.0
  %393 = vmatmul.mubr.f32.gmra.mrb[0].mxu0 %v257
  %v394 = vpop.f32.mrb[0].mxu0
  %v395 = vadd.f32 %v286, %v394
  %v396 = vpop.f32.mrb[0].mxu0
  %397 = vmatprep.mubr.f32.mxu0 0.0
  %398 = vmatmul.mubr.f32.gmra.mrb[0].mxu0 %v258
  %v399 = vpop.f32.mrb[0].mxu0
  %v400 = vadd.f32 %v286, %v399
  %v401 = vpop.f32.mrb[0].mxu0
  %402 = vmatprep.mubr.f32.mxu0 0.0
  %403 = vmatmul.mubr.f32.gmra.mrb[0].mxu0 %v259
  %v404 = vpop.f32.mrb[0].mxu0
  %v405 = vadd.f32 %v286, %v404
  %v406 = vpop.f32.mrb[0].mxu0
  %407 = vmatprep.mubr.f32.mxu0 0.0
  %408 = vmatmul.mubr.f32.gmra.mrb[0].mxu0 %v260
  %v409 = vpop.f32.mrb[0].mxu0
  %v410 = vadd.f32 %v286, %v409
  %v411 = vpop.f32.mrb[0].mxu0
  %412 = vmatprep.mubr.f32.mxu0 0.0
  %413 = vmatmul.mubr.f32.gmra.mrb[0].mxu0 %v261
  %v414 = vpop.f32.mrb[0].mxu0
  %v415 = vadd.f32 %v286, %v414
  %v416 = vpop.f32.mrb[0].mxu0
  %417 = vmatprep.mubr.f32.mxu0 0.0
  %418 = vmatmul.mubr.f32.gmra.mrb[0].mxu0 %v262
  %v419 = vpop.f32.mrb[0].mxu0
  %v420 = vadd.f32 %v286, %v419
  %v421 = vpop.f32.mrb[0].mxu0
  %422 = vmatprep.mubr.f32.mxu0 0.0
  %423 = vmatmul.mubr.f32.gmra.mrb[0].mxu0 %v263
  %v424 = vpop.f32.mrb[0].mxu0
  %v425 = vadd.f32 %v286, %v424
  %v426 = vpop.f32.mrb[0].mxu0
  %427 = vmatprep.mubr.f32.mxu0 0.0
  %428 = vmatmul.mubr.f32.gmra.mrb[0].mxu0 %v264
  %v429 = vpop.f32.mrb[0].mxu0
  %v430 = vadd.f32 %v286, %v429
  %v431 = vpop.f32.mrb[0].mxu0
  %432 = vdwg.mxu0
  %v433 = vmax.f32 %v355, 0.0
  %v434 = vmax.f32 %v360, 0.0
  %v435 = vmax.f32 %v365, 0.0
  %v436 = vmax.f32 %v370, 0.0
  %v437 = vmax.f32 %v375, 0.0
  %v438 = vmax.f32 %v380, 0.0
  %v439 = vmax.f32 %v385, 0.0
  %v440 = vmax.f32 %v390, 0.0
  %v441 = vmax.f32 %v395, 0.0
  %v442 = vmax.f32 %v400, 0.0
  %v443 = vmax.f32 %v405, 0.0
  %v444 = vmax.f32 %v410, 0.0
  %v445 = vmax.f32 %v415, 0.0
  %v446 = vmax.f32 %v420, 0.0
  %v447 = vmax.f32 %v425, 0.0
  %v448 = vmax.f32 %v430, 0.0
  %v449 = vld [vmem:[%s5] sm:$0x1]
  %v451 = vlaneseq
  %v452 = vshrl.u32 %v451, 7
  %v453 = vsub.s32 0, %v452
  %v454 = vrot.slane %v449, %v453
  %v456 = vmul.f32 %v433, %v454
  %v457 = vmul.f32 %v434, %v454
  %v458 = vmul.f32 %v435, %v454
  %v459 = vmul.f32 %v436, %v454
  %v460 = vmul.f32 %v437, %v454
  %v461 = vmul.f32 %v438, %v454
  %v462 = vmul.f32 %v439, %v454
  %v463 = vmul.f32 %v440, %v454
  %v464 = vmul.f32 %v441, %v454
  %v465 = vmul.f32 %v442, %v454
  %v466 = vmul.f32 %v443, %v454
  %v467 = vmul.f32 %v444, %v454
  %v468 = vmul.f32 %v445, %v454
  %v469 = vmul.f32 %v446, %v454
  %v470 = vmul.f32 %v447, %v454
  %v471 = vmul.f32 %v448, %v454
  %472 = vadd.xlane.f32.xlu0 %v456
  %v473 = vpop.xlane.xlu0 %472
  %474 = vadd.xlane.f32.xlu0 %v457
  %v475 = vpop.xlane.xlu0 %474
  %476 = vadd.xlane.f32.xlu0 %v458
  %v477 = vpop.xlane.xlu0 %476
  %478 = vadd.xlane.f32.xlu0 %v459
  %v479 = vpop.xlane.xlu0 %478
  %480 = vadd.xlane.f32.xlu0 %v460
  %v481 = vpop.xlane.xlu0 %480
  %482 = vadd.xlane.f32.xlu0 %v461
  %v483 = vpop.xlane.xlu0 %482
  %484 = vadd.xlane.f32.xlu0 %v462
  %v485 = vpop.xlane.xlu0 %484
  %486 = vadd.xlane.f32.xlu0 %v463
  %v487 = vpop.xlane.xlu0 %486
  %488 = vadd.xlane.f32.xlu0 %v464
  %v489 = vpop.xlane.xlu0 %488
  %490 = vadd.xlane.f32.xlu0 %v465
  %v491 = vpop.xlane.xlu0 %490
  %492 = vadd.xlane.f32.xlu0 %v466
  %v493 = vpop.xlane.xlu0 %492
  %494 = vadd.xlane.f32.xlu0 %v467
  %v495 = vpop.xlane.xlu0 %494
  %496 = vadd.xlane.f32.xlu0 %v468
  %v497 = vpop.xlane.xlu0 %496
  %498 = vadd.xlane.f32.xlu0 %v469
  %v499 = vpop.xlane.xlu0 %498
  %500 = vadd.xlane.f32.xlu0 %v470
  %v501 = vpop.xlane.xlu0 %500
  %502 = vadd.xlane.f32.xlu0 %v471
  %v503 = vpop.xlane.xlu0 %502
  %v504 = vld [vmem:[#allocation2] sm:$0x1]
  %506 = vset.pattern.permute.xlu0 0
  %507 = vperm.xlu0 %506, %v504
  %v508 = vpop.permute.xlu0 %507
  %v510 = vlaneseq
  %v511 = vshrl.u32 %v510, 7
  %v512 = vsub.s32 0, %v511
  %v513 = vrot.slane %v508, %v512
  %v514 = vadd.f32 %v473, %v513
  %v515 = vadd.f32 %v475, %v513
  %v516 = vadd.f32 %v477, %v513
  %v517 = vadd.f32 %v479, %v513
  %v518 = vadd.f32 %v481, %v513
  %v519 = vadd.f32 %v483, %v513
  %v520 = vadd.f32 %v485, %v513
  %v521 = vadd.f32 %v487, %v513
  %v522 = vadd.f32 %v489, %v513
  %v523 = vadd.f32 %v491, %v513
  %v524 = vadd.f32 %v493, %v513
  %v525 = vadd.f32 %v495, %v513
  %v526 = vadd.f32 %v497, %v513
  %v527 = vadd.f32 %v499, %v513
  %v528 = vadd.f32 %v501, %v513
  %v529 = vadd.f32 %v503, %v513
  %v546 = vlaneseq
  %v547 = vand.u32 %v546, 127
  %v548 = vlaneseq
  %v549 = vshrl.u32 %v548, 7
  %v550 = vsub.s32 %v547, %v549
  %v551 = vrot.slane %v514, %v550
  %v552 = vadd.s32 %v547, 4294967288
  %v553 = vlaneseq
  %v554 = vshrl.u32 %v553, 7
  %v555 = vsub.s32 %v552, %v554
  %v556 = vrot.slane %v515, %v555
  %vm557 = vcmask 130112
  %v558 = vsel %vm557, %v556, %v551
  %v559 = vadd.s32 %v547, 4294967280
  %v560 = vlaneseq
  %v561 = vshrl.u32 %v560, 7
  %v562 = vsub.s32 %v559, %v561
  %v563 = vrot.slane %v516, %v562
  %vm564 = vcmask 195712
  %v565 = vsel %vm564, %v563, %v558
  %v566 = vadd.s32 %v547, 4294967272
  %v567 = vlaneseq
  %v568 = vshrl.u32 %v567, 7
  %v569 = vsub.s32 %v566, %v568
  %v570 = vrot.slane %v517, %v569
  %vm571 = vcmask 261312
  %v572 = vsel %vm571, %v570, %v565
  %v573 = vadd.s32 %v547, 4294967264
  %v574 = vlaneseq
  %v575 = vshrl.u32 %v574, 7
  %v576 = vsub.s32 %v573, %v575
  %v577 = vrot.slane %v518, %v576
  %vm578 = vcmask 326912
  %v579 = vsel %vm578, %v577, %v572
  %v580 = vadd.s32 %v547, 4294967256
  %v581 = vlaneseq
  %v582 = vshrl.u32 %v581, 7
  %v583 = vsub.s32 %v580, %v582
  %v584 = vrot.slane %v519, %v583
  %vm585 = vcmask 392512
  %v586 = vsel %vm585, %v584, %v579
  %v587 = vadd.s32 %v547, 4294967248
  %v588 = vlaneseq
  %v589 = vshrl.u32 %v588, 7
  %v590 = vsub.s32 %v587, %v589
  %v591 = vrot.slane %v520, %v590
  %vm592 = vcmask 458112
  %v593 = vsel %vm592, %v591, %v586
  %v594 = vadd.s32 %v547, 4294967240
  %v595 = vlaneseq
  %v596 = vshrl.u32 %v595, 7
  %v597 = vsub.s32 %v594, %v596
  %v598 = vrot.slane %v521, %v597
  %vm599 = vcmask 523712
  %v600 = vsel %vm599, %v598, %v593
  %v601 = vadd.s32 %v547, 4294967232
  %v602 = vlaneseq
  %v603 = vshrl.u32 %v602, 7
  %v604 = vsub.s32 %v601, %v603
  %v605 = vrot.slane %v522, %v604
  %vm606 = vcmask 589312
  %v607 = vsel %vm606, %v605, %v600
  %v608 = vadd.s32 %v547, 4294967224
  %v609 = vlaneseq
  %v610 = vshrl.u32 %v609, 7
  %v611 = vsub.s32 %v608, %v610
  %v612 = vrot.slane %v523, %v611
  %vm613 = vcmask 654912
  %v614 = vsel %vm613, %v612, %v607
  %v615 = vadd.s32 %v547, 4294967216
  %v616 = vlaneseq
  %v617 = vshrl.u32 %v616, 7
  %v618 = vsub.s32 %v615, %v617
  %v619 = vrot.slane %v524, %v618
  %vm620 = vcmask 720512
  %v621 = vsel %vm620, %v619, %v614
  %v622 = vadd.s32 %v547, 4294967208
  %v623 = vlaneseq
  %v624 = vshrl.u32 %v623, 7
  %v625 = vsub.s32 %v622, %v624
  %v626 = vrot.slane %v525, %v625
  %vm627 = vcmask 786112
  %v628 = vsel %vm627, %v626, %v621
  %v629 = vadd.s32 %v547, 4294967200
  %v630 = vlaneseq
  %v631 = vshrl.u32 %v630, 7
  %v632 = vsub.s32 %v629, %v631
  %v633 = vrot.slane %v526, %v632
  %vm634 = vcmask 851712
  %v635 = vsel %vm634, %v633, %v628
  %v636 = vadd.s32 %v547, 4294967192
  %v637 = vlaneseq
  %v638 = vshrl.u32 %v637, 7
  %v639 = vsub.s32 %v636, %v638
  %v640 = vrot.slane %v527, %v639
  %vm641 = vcmask 917312
  %v642 = vsel %vm641, %v640, %v635
  %v643 = vadd.s32 %v547, 4294967184
  %v644 = vlaneseq
  %v645 = vshrl.u32 %v644, 7
  %v646 = vsub.s32 %v643, %v645
  %v647 = vrot.slane %v528, %v646
  %vm648 = vcmask 982912
  %v649 = vsel %vm648, %v647, %v642
  %v650 = vadd.s32 %v547, 4294967176
  %v651 = vlaneseq
  %v652 = vshrl.u32 %v651, 7
  %v653 = vsub.s32 %v650, %v652
  %v654 = vrot.slane %v529, %v653
  %vm655 = vcmask 1048512
  %v656 = vsel %vm655, %v654, %v649
  %658 = vst [vmem:[%s7] sm:$0x1] %v656
  // Predicated region
  $region30: #{audio_sentiment_forward.1} parent=0 // pred_check
    _
  $region31: #{audio_sentiment_forward.1} parent=0 // pred_check_branch
    %660 = sbr.rel (0) target = $region33
  $region32: #{audio_sentiment_forward.1} parent=0 // pred_region
    _
  $region33: #{audio_sentiment_forward.1} parent=0 // pred_fallthru
    _
  // Predicated region
  $region34: #{audio_sentiment_forward.1} parent=0 // pred_check
    _
  $region35: #{audio_sentiment_forward.1} parent=0 // pred_check_branch
    %662 = sbr.rel (0) target = $region37
  $region36: #{audio_sentiment_forward.1} parent=0 // pred_region
    _
  $region37: #{audio_sentiment_forward.1} parent=0 // pred_fallthru
    _

</llo_original>
